<compile_context>
chip_gen: v7x
topology: tpu7x:2x2x1
jax: 0.10.0
libtpu: 0.0.40
codegen_flags: <defaults>
</compile_context>

<pallas_src>
import functools

import jax
import jax.numpy as jnp
from jax import lax
from jax.experimental import pallas as pl
from jax.experimental.pallas import tpu as pltpu


def _round_up(x, m):
    return ((x + m - 1) // m) * m


def _cdiv(a, b):
    return -(-a // b)


def _vmem_capacity_bytes():
    try:
        return int(pltpu.get_tpu_info().vmem_capacity_bytes)
    except Exception:
        return 64 << 20  # conservative (v7x-sized) fallback


def _segmented_butterfly(x, lane, seg, combine):
    """Reduce `x` with `combine` within aligned lane groups of size `seg`.

    `seg` must be a power of two and groups must be aligned to multiples of
    `seg` (true for the slab packing below).  Every lane of a group ends up
    holding the full group reduction.  The XOR-butterfly partner x[i ^ s] is
    picked from the two candidate rotations by comparing a rolled copy of the
    lane-index map, so the code does not depend on pltpu.roll's rotation
    convention.  All ops run on the XLU / VPU (MXU stays free).
    """
    n = x.shape[-1]
    s = 1
    while s < seg:
        xor_s = lane + s - 2 * (lane & s)            # lane ^ s (s is a pow2)
        idx_a = pltpu.roll(lane, shift=s, axis=1)    # source lane of roll_a
        roll_a = pltpu.roll(x, shift=s, axis=1)
        roll_b = pltpu.roll(x, shift=n - s, axis=1)
        partner = jnp.where(idx_a == xor_s, roll_a, roll_b)
        x = combine(x, partner)
        s *= 2
    return x


def _decoder_kernel(zg_ref, w1_ref, b1_ref, w2_ref, b2_ref, out_ref, *,
                    group, out_dim):
    # One slab tile: (tg, group*input_dim), 128-lane dense, bf16.
    zg = zg_ref[...]

    # fc1 + ReLU.  MXU operands bf16, accumulation + bias + relu in f32.
    h = jnp.dot(zg, w1_ref[...], preferred_element_type=jnp.float32)
    h = jnp.maximum(h + b1_ref[...], 0.0)

    # fc2 -> logits; lane block [r*out_dim, (r+1)*out_dim) is original row r.
    logits = jnp.dot(h.astype(w2_ref.dtype), w2_ref[...],
                     preferred_element_type=jnp.float32) + b2_ref[...]

    if group > 1:
        # Per-output_dim-group stable softmax via lane-segmented reductions.
        lane = lax.broadcasted_iota(jnp.int32, logits.shape, 1)
        m = _segmented_butterfly(logits, lane, out_dim, jnp.maximum)
        p = jnp.exp(logits - m)                      # exact per-group max
        denom = _segmented_butterfly(p, lane, out_dim, jnp.add)
    else:
        # Lane-sparse fallback (output_dim does not divide 128 / too wide).
        m = jnp.max(logits, axis=-1, keepdims=True)
        p = jnp.exp(logits - m)
        denom = jnp.sum(p, axis=-1, keepdims=True)

    inv = pl.reciprocal(denom, approx=True)          # EUP slot (otherwise idle)
    inv = inv * (2.0 - denom * inv)                  # one Newton step -> ~f32
    out_ref[...] = (p * inv).astype(out_ref.dtype)


def prepare_decoder_params(w1, b1, w2, b2):
    """One-time weight prep (hoist out of the per-call path).

    Packs group = 128 // output_dim consecutive rows into one 128-lane slab
    row and builds the matching block-diagonal kron(I_group, W) weights so
    every load / VPU / EUP op and store in the kernel is 128-lane dense.
    Weights are stored bf16 (MXU operands); biases stay f32.
    """
    input_dim, hidden_dim = w1.shape
    output_dim = w2.shape[1]

    group = 128 // output_dim if (0 < output_dim <= 128
                                  and 128 % output_dim == 0) else 1
    # Generation-aware guard: replicated block-diagonal weights must leave room
    # for double-buffered activation tiles and compiler scratch in scoped VMEM.
    weight_budget = _vmem_capacity_bytes() // 4
    if group > 1 and 2 * group * group * (
            input_dim * hidden_dim + hidden_dim * output_dim) > weight_budget:
        group = 1  # TODO(synk): lane-sparse tiled path for very wide layers.

    g = group
    eye = jnp.eye(g, dtype=jnp.float32)
    w1b = jnp.kron(eye, w1.astype(jnp.float32)).astype(jnp.bfloat16)  # (g*in, g*hid)
    w2b = jnp.kron(eye, w2.astype(jnp.float32)).astype(jnp.bfloat16)  # (g*hid, g*out)
    b1t = jnp.tile(jnp.reshape(b1, (1, hidden_dim)).astype(jnp.float32), (1, g))
    b2t = jnp.tile(jnp.reshape(b2, (1, output_dim)).astype(jnp.float32), (1, g))
    return {"w1b": w1b, "b1t": b1t, "w2b": w2b, "b2t": b2t, "group": g}


@functools.partial(jax.jit,
                   static_argnames=("num_nodes", "group", "tile_rows", "out_dtype"))
def graph_decoder_apply(z, w1b, b1t, w2b, b2t, *, num_nodes, group,
                        tile_rows=4096, out_dtype=jnp.float32):
    """softmax(fc2(relu(fc1(z))), last dim) reshaped to [-1, num_nodes, output_dim]."""
    n, input_dim = z.shape
    g = group
    gi, gh, go = g * input_dim, b1t.shape[1], b2t.shape[1]
    output_dim = go // g
    assert w1b.shape == (gi, gh) and w2b.shape == (gh, go)

    # ---- tile / grid sizing --------------------------------------------------
    n_slab = _cdiv(n, g)                               # rows after slab packing
    tg_cap = max(8, ((tile_rows // g) // 8) * 8)       # cap, in slab rows
    steps = _cdiv(n_slab, tg_cap)
    if n_slab >= 16:                                   # enough work to split
        steps = max(steps, 2)                          # >=2 steps so both v7x
        steps += steps % 2                             # TensorCores get work
    tg = min(tg_cap, _round_up(_cdiv(n_slab, steps), 8))
    grid_steps = _cdiv(n_slab, tg)
    n_slab_pad = grid_steps * tg
    n_pad = n_slab_pad * g

    # ---- wrapper-side layout plumbing (cheap XLA reshapes) -------------------
    z_pad = jnp.pad(z.astype(jnp.float32), ((0, n_pad - n), (0, 0)))
    zg = z_pad.reshape(n_slab_pad, gi).astype(jnp.bfloat16)   # bf16 MXU operand

    # ---- explicit VMEM budget from the real working set ----------------------
    out_isz = jnp.dtype(out_dtype).itemsize
    weight_bytes = 2 * (gi * gh + gh * go) + 4 * (gh + go)
    act_bytes = 2 * tg * gi * 2 + 2 * tg * go * out_isz       # double-buffered
    scratch_bytes = tg * (gh + 4 * go) * 4                    # h / logits / p / tmp
    need = 2 * weight_bytes + act_bytes + scratch_bytes
    vmem_limit = int(min(0.9 * _vmem_capacity_bytes(), max(2 * need, 32 << 20)))

    flops = 2 * n_slab_pad * (gi * gh + gh * go)
    transcendentals = n_slab_pad * go
    bytes_accessed = 2 * n_slab_pad * gi + out_isz * n_slab_pad * go + weight_bytes

    kernel = functools.partial(_decoder_kernel, group=g, out_dim=output_dim)
    out_slab = pl.pallas_call(
        kernel,
        out_shape=jax.ShapeDtypeStruct((n_slab_pad, go), out_dtype),
        grid_spec=pltpu.PrefetchScalarGridSpec(
            num_scalar_prefetch=0,
            grid=(grid_steps,),
            in_specs=[
                pl.BlockSpec((tg, gi), lambda i: (i, 0)),   # activations: tiled
                pl.BlockSpec((gi, gh), lambda i: (0, 0)),   # constant blocks:
                pl.BlockSpec((1, gh), lambda i: (0, 0)),    # fetched once, stay
                pl.BlockSpec((gh, go), lambda i: (0, 0)),   # resident in VMEM
                pl.BlockSpec((1, go), lambda i: (0, 0)),
            ],
            out_specs=pl.BlockSpec((tg, go), lambda i: (i, 0)),
        ),
        compiler_params=pltpu.CompilerParams(
            dimension_semantics=("parallel",),
            vmem_limit_bytes=vmem_limit,
        ),
        cost_estimate=pl.CostEstimate(
            flops=int(flops),
            transcendentals=int(transcendentals),
            bytes_accessed=int(bytes_accessed),
        ),
    )(zg, w1b, b1t, w2b, b2t)

    # Undo the slab packing (row-major order preserved) -> torch semantics.
    out_flat = out_slab.reshape(n_slab_pad * g, output_dim)[:n]
    return out_flat.reshape(-1, num_nodes, output_dim)


def graph_decoder_forward(z, w1, b1, w2, b2, *, num_nodes, tile_rows=4096,
                          out_dtype=jnp.float32):
    """Convenience wrapper matching the torch module.  For repeated calls,
    hoist prepare_decoder_params() and call graph_decoder_apply directly."""
    p = prepare_decoder_params(w1, b1, w2, b2)
    return graph_decoder_apply(z, p["w1b"], p["b1t"], p["w2b"], p["b2t"],
                               num_nodes=num_nodes, group=p["group"],
                               tile_rows=tile_rows, out_dtype=out_dtype)


def init_linear_params(key, in_features, out_features):
    """Deterministic init mimicking torch.nn.Linear (uniform +/- 1/sqrt(fan_in))."""
    kw, kb = jax.random.split(key)
    bound = 1.0 / jnp.sqrt(jnp.float32(in_features))
    # stored transposed vs torch ([in, out]) so the kernel does z @ W
    w = jax.random.uniform(kw, (in_features, out_features), jnp.float32, -bound, bound)
    b = jax.random.uniform(kb, (1, out_features), jnp.float32, -bound, bound)
    return w, b


def reference_forward(z, w1, b1, w2, b2, num_nodes):
    h = jnp.maximum(z @ w1 + b1, 0.0)
    h = h @ w2 + b2
    x_hat = h.reshape(-1, num_nodes, h.shape[-1])
    return jax.nn.softmax(x_hat, axis=2)


if __name__ == "__main__":
    # small shapes consistent with the module
    input_dim, hidden_dim, output_dim = 32, 64, 16
    batch, num_nodes = 2, 8
    n = batch * num_nodes  # 16 rows

    key = jax.random.PRNGKey(0)
    kz, k1, k2 = jax.random.split(key, 3)

    z = jax.random.normal(kz, (n, input_dim), jnp.float32)
    w1, b1 = init_linear_params(k1, input_dim, hidden_dim)
    w2, b2 = init_linear_params(k2, hidden_dim, output_dim)

    # Hoisted weight prep (built once, reused across forwards).
    params = prepare_decoder_params(w1, b1, w2, b2)
    x_hat = graph_decoder_apply(z, params["w1b"], params["b1t"],
                                params["w2b"], params["b2t"],
                                num_nodes=num_nodes, group=params["group"])
    x_hat = jax.block_until_ready(x_hat)

    # Sanity check against a pure-f32 JAX reference.  Tolerance covers bf16
    # MXU operands (f32 accumulation); the softmax chain itself is exact f32.
    ref = reference_forward(z, w1, b1, w2, b2, num_nodes)
    assert x_hat.shape == (batch, num_nodes, output_dim)
    assert jnp.allclose(x_hat, ref, atol=3e-3, rtol=3e-3), float(
        jnp.max(jnp.abs(x_hat - ref)))

    print("KERNEL_OK")
</pallas_src>

<mosaic_0001>
module attributes {stable_mosaic.version = 11 : i64} {
  func.func @_decoder_kernel(%arg0: i32, %arg1: memref<8x256xbf16, #tpu.memory_space<vmem>>, %arg2: memref<256x512xbf16, #tpu.memory_space<vmem>>, %arg3: memref<1x512xf32, #tpu.memory_space<vmem>>, %arg4: memref<512x128xbf16, #tpu.memory_space<vmem>>, %arg5: memref<1x128xf32, #tpu.memory_space<vmem>>, %arg6: memref<8x128xf32, #tpu.memory_space<vmem>>) attributes {dimension_semantics = [#tpu.dimension_semantics<parallel>], iteration_bounds = array<i64: 1>, scalar_prefetch = 0 : i64, scratch_operands = 0 : i64, tpu.core_type = #tpu.core_type<tc>, window_params = [{transform_indices = @transform_0, window_bounds = array<i64: 8, 256>}, {pipeline_mode = #tpu.pipeline_mode<synchronous>, transform_indices = @transform_1, window_bounds = array<i64: 256, 512>}, {pipeline_mode = #tpu.pipeline_mode<synchronous>, transform_indices = @transform_2, window_bounds = array<i64: 1, 512>}, {pipeline_mode = #tpu.pipeline_mode<synchronous>, transform_indices = @transform_3, window_bounds = array<i64: 512, 128>}, {pipeline_mode = #tpu.pipeline_mode<synchronous>, transform_indices = @transform_4, window_bounds = array<i64: 1, 128>}, {transform_indices = @transform_5, window_bounds = array<i64: 8, 128>}]} {
    %c0 = arith.constant 0 : index
    %c0_0 = arith.constant 0 : index
    %0 = vector.load %arg1[%c0, %c0_0] : memref<8x256xbf16, #tpu.memory_space<vmem>>, vector<8x256xbf16>
    %c0_1 = arith.constant 0 : index
    %c0_2 = arith.constant 0 : index
    %1 = vector.load %arg2[%c0_1, %c0_2] : memref<256x512xbf16, #tpu.memory_space<vmem>>, vector<256x512xbf16>
    %cst = arith.constant dense<0.000000e+00> : vector<8x512xf32>
    %2 = tpu.matmul %0, %1, %cst {dimension_numbers = #tpu.dot_dimension_numbers<[1], [0], [0], [1], [0, 0, 1, 1], [], []>} : vector<8x256xbf16>, vector<256x512xbf16>, vector<8x512xf32> -> vector<8x512xf32>
    %c0_3 = arith.constant 0 : index
    %c0_4 = arith.constant 0 : index
    %3 = vector.load %arg3[%c0_3, %c0_4] : memref<1x512xf32, #tpu.memory_space<vmem>>, vector<1x512xf32>
    %4 = vector.broadcast %3 : vector<1x512xf32> to vector<8x512xf32>
    %5 = arith.addf %2, %4 : vector<8x512xf32>
    %cst_5 = arith.constant 0.000000e+00 : f32
    %6 = vector.broadcast %cst_5 : f32 to vector<8x512xf32>
    %7 = arith.maximumf %5, %6 : vector<8x512xf32>
    %8 = arith.truncf %7 : vector<8x512xf32> to vector<8x512xbf16>
    %c0_6 = arith.constant 0 : index
    %c0_7 = arith.constant 0 : index
    %9 = vector.load %arg4[%c0_6, %c0_7] : memref<512x128xbf16, #tpu.memory_space<vmem>>, vector<512x128xbf16>
    %cst_8 = arith.constant dense<0.000000e+00> : vector<8x128xf32>
    %10 = tpu.matmul %8, %9, %cst_8 {dimension_numbers = #tpu.dot_dimension_numbers<[1], [0], [0], [1], [0, 0, 1, 1], [], []>} : vector<8x512xbf16>, vector<512x128xbf16>, vector<8x128xf32> -> vector<8x128xf32>
    %c0_9 = arith.constant 0 : index
    %c0_10 = arith.constant 0 : index
    %11 = vector.load %arg5[%c0_9, %c0_10] : memref<1x128xf32, #tpu.memory_space<vmem>>, vector<1x128xf32>
    %12 = vector.broadcast %11 : vector<1x128xf32> to vector<8x128xf32>
    %13 = arith.addf %10, %12 : vector<8x128xf32>
    %14 = tpu.iota {dimensions = array<i32: 1>} : vector<8x128xi32>
    %c1_i32 = arith.constant 1 : i32
    %15 = vector.broadcast %c1_i32 : i32 to vector<8x128xi32>
    %16 = arith.addi %14, %15 : vector<8x128xi32>
    %c1_i32_11 = arith.constant 1 : i32
    %17 = vector.broadcast %c1_i32_11 : i32 to vector<8x128xi32>
    %18 = arith.andi %14, %17 : vector<8x128xi32>
    %c2_i32 = arith.constant 2 : i32
    %19 = vector.broadcast %c2_i32 : i32 to vector<8x128xi32>
    %20 = arith.muli %19, %18 : vector<8x128xi32>
    %21 = arith.subi %16, %20 : vector<8x128xi32>
    %c1_i32_12 = arith.constant 1 : i32
    %22 = tpu.dynamic_rotate %14 by %c1_i32_12 dim 1 : vector<8x128xi32>, i32 -> vector<8x128xi32>
    %c1_i32_13 = arith.constant 1 : i32
    %23 = tpu.dynamic_rotate %13 by %c1_i32_13 dim 1 : vector<8x128xf32>, i32 -> vector<8x128xf32>
    %c127_i32 = arith.constant 127 : i32
    %24 = tpu.dynamic_rotate %13 by %c127_i32 dim 1 : vector<8x128xf32>, i32 -> vector<8x128xf32>
    %25 = arith.cmpi eq, %22, %21 : vector<8x128xi32>
    %26 = arith.select %25, %23, %24 : vector<8x128xi1>, vector<8x128xf32>
    %27 = arith.maximumf %13, %26 : vector<8x128xf32>
    %c2_i32_14 = arith.constant 2 : i32
    %28 = vector.broadcast %c2_i32_14 : i32 to vector<8x128xi32>
    %29 = arith.addi %14, %28 : vector<8x128xi32>
    %c2_i32_15 = arith.constant 2 : i32
    %30 = vector.broadcast %c2_i32_15 : i32 to vector<8x128xi32>
    %31 = arith.andi %14, %30 : vector<8x128xi32>
    %c2_i32_16 = arith.constant 2 : i32
    %32 = vector.broadcast %c2_i32_16 : i32 to vector<8x128xi32>
    %33 = arith.muli %32, %31 : vector<8x128xi32>
    %34 = arith.subi %29, %33 : vector<8x128xi32>
    %c2_i32_17 = arith.constant 2 : i32
    %35 = tpu.dynamic_rotate %14 by %c2_i32_17 dim 1 : vector<8x128xi32>, i32 -> vector<8x128xi32>
    %c2_i32_18 = arith.constant 2 : i32
    %36 = tpu.dynamic_rotate %27 by %c2_i32_18 dim 1 : vector<8x128xf32>, i32 -> vector<8x128xf32>
    %c126_i32 = arith.constant 126 : i32
    %37 = tpu.dynamic_rotate %27 by %c126_i32 dim 1 : vector<8x128xf32>, i32 -> vector<8x128xf32>
    %38 = arith.cmpi eq, %35, %34 : vector<8x128xi32>
    %39 = arith.select %38, %36, %37 : vector<8x128xi1>, vector<8x128xf32>
    %40 = arith.maximumf %27, %39 : vector<8x128xf32>
    %c4_i32 = arith.constant 4 : i32
    %41 = vector.broadcast %c4_i32 : i32 to vector<8x128xi32>
    %42 = arith.addi %14, %41 : vector<8x128xi32>
    %c4_i32_19 = arith.constant 4 : i32
    %43 = vector.broadcast %c4_i32_19 : i32 to vector<8x128xi32>
    %44 = arith.andi %14, %43 : vector<8x128xi32>
    %c2_i32_20 = arith.constant 2 : i32
    %45 = vector.broadcast %c2_i32_20 : i32 to vector<8x128xi32>
    %46 = arith.muli %45, %44 : vector<8x128xi32>
    %47 = arith.subi %42, %46 : vector<8x128xi32>
    %c4_i32_21 = arith.constant 4 : i32
    %48 = tpu.dynamic_rotate %14 by %c4_i32_21 dim 1 : vector<8x128xi32>, i32 -> vector<8x128xi32>
    %c4_i32_22 = arith.constant 4 : i32
    %49 = tpu.dynamic_rotate %40 by %c4_i32_22 dim 1 : vector<8x128xf32>, i32 -> vector<8x128xf32>
    %c124_i32 = arith.constant 124 : i32
    %50 = tpu.dynamic_rotate %40 by %c124_i32 dim 1 : vector<8x128xf32>, i32 -> vector<8x128xf32>
    %51 = arith.cmpi eq, %48, %47 : vector<8x128xi32>
    %52 = arith.select %51, %49, %50 : vector<8x128xi1>, vector<8x128xf32>
    %53 = arith.maximumf %40, %52 : vector<8x128xf32>
    %c8_i32 = arith.constant 8 : i32
    %54 = vector.broadcast %c8_i32 : i32 to vector<8x128xi32>
    %55 = arith.addi %14, %54 : vector<8x128xi32>
    %c8_i32_23 = arith.constant 8 : i32
    %56 = vector.broadcast %c8_i32_23 : i32 to vector<8x128xi32>
    %57 = arith.andi %14, %56 : vector<8x128xi32>
    %c2_i32_24 = arith.constant 2 : i32
    %58 = vector.broadcast %c2_i32_24 : i32 to vector<8x128xi32>
    %59 = arith.muli %58, %57 : vector<8x128xi32>
    %60 = arith.subi %55, %59 : vector<8x128xi32>
    %c8_i32_25 = arith.constant 8 : i32
    %61 = tpu.dynamic_rotate %14 by %c8_i32_25 dim 1 : vector<8x128xi32>, i32 -> vector<8x128xi32>
    %c8_i32_26 = arith.constant 8 : i32
    %62 = tpu.dynamic_rotate %53 by %c8_i32_26 dim 1 : vector<8x128xf32>, i32 -> vector<8x128xf32>
    %c120_i32 = arith.constant 120 : i32
    %63 = tpu.dynamic_rotate %53 by %c120_i32 dim 1 : vector<8x128xf32>, i32 -> vector<8x128xf32>
    %64 = arith.cmpi eq, %61, %60 : vector<8x128xi32>
    %65 = arith.select %64, %62, %63 : vector<8x128xi1>, vector<8x128xf32>
    %66 = arith.maximumf %53, %65 : vector<8x128xf32>
    %67 = arith.subf %13, %66 : vector<8x128xf32>
    %68 = math.exp %67 : vector<8x128xf32>
    %c1_i32_27 = arith.constant 1 : i32
    %69 = vector.broadcast %c1_i32_27 : i32 to vector<8x128xi32>
    %70 = arith.addi %14, %69 : vector<8x128xi32>
    %c1_i32_28 = arith.constant 1 : i32
    %71 = vector.broadcast %c1_i32_28 : i32 to vector<8x128xi32>
    %72 = arith.andi %14, %71 : vector<8x128xi32>
    %c2_i32_29 = arith.constant 2 : i32
    %73 = vector.broadcast %c2_i32_29 : i32 to vector<8x128xi32>
    %74 = arith.muli %73, %72 : vector<8x128xi32>
    %75 = arith.subi %70, %74 : vector<8x128xi32>
    %c1_i32_30 = arith.constant 1 : i32
    %76 = tpu.dynamic_rotate %14 by %c1_i32_30 dim 1 : vector<8x128xi32>, i32 -> vector<8x128xi32>
    %c1_i32_31 = arith.constant 1 : i32
    %77 = tpu.dynamic_rotate %68 by %c1_i32_31 dim 1 : vector<8x128xf32>, i32 -> vector<8x128xf32>
    %c127_i32_32 = arith.constant 127 : i32
    %78 = tpu.dynamic_rotate %68 by %c127_i32_32 dim 1 : vector<8x128xf32>, i32 -> vector<8x128xf32>
    %79 = arith.cmpi eq, %76, %75 : vector<8x128xi32>
    %80 = arith.select %79, %77, %78 : vector<8x128xi1>, vector<8x128xf32>
    %81 = arith.addf %68, %80 : vector<8x128xf32>
    %c2_i32_33 = arith.constant 2 : i32
    %82 = vector.broadcast %c2_i32_33 : i32 to vector<8x128xi32>
    %83 = arith.addi %14, %82 : vector<8x128xi32>
    %c2_i32_34 = arith.constant 2 : i32
    %84 = vector.broadcast %c2_i32_34 : i32 to vector<8x128xi32>
    %85 = arith.andi %14, %84 : vector<8x128xi32>
    %c2_i32_35 = arith.constant 2 : i32
    %86 = vector.broadcast %c2_i32_35 : i32 to vector<8x128xi32>
    %87 = arith.muli %86, %85 : vector<8x128xi32>
    %88 = arith.subi %83, %87 : vector<8x128xi32>
    %c2_i32_36 = arith.constant 2 : i32
    %89 = tpu.dynamic_rotate %14 by %c2_i32_36 dim 1 : vector<8x128xi32>, i32 -> vector<8x128xi32>
    %c2_i32_37 = arith.constant 2 : i32
    %90 = tpu.dynamic_rotate %81 by %c2_i32_37 dim 1 : vector<8x128xf32>, i32 -> vector<8x128xf32>
    %c126_i32_38 = arith.constant 126 : i32
    %91 = tpu.dynamic_rotate %81 by %c126_i32_38 dim 1 : vector<8x128xf32>, i32 -> vector<8x128xf32>
    %92 = arith.cmpi eq, %89, %88 : vector<8x128xi32>
    %93 = arith.select %92, %90, %91 : vector<8x128xi1>, vector<8x128xf32>
    %94 = arith.addf %81, %93 : vector<8x128xf32>
    %c4_i32_39 = arith.constant 4 : i32
    %95 = vector.broadcast %c4_i32_39 : i32 to vector<8x128xi32>
    %96 = arith.addi %14, %95 : vector<8x128xi32>
    %c4_i32_40 = arith.constant 4 : i32
    %97 = vector.broadcast %c4_i32_40 : i32 to vector<8x128xi32>
    %98 = arith.andi %14, %97 : vector<8x128xi32>
    %c2_i32_41 = arith.constant 2 : i32
    %99 = vector.broadcast %c2_i32_41 : i32 to vector<8x128xi32>
    %100 = arith.muli %99, %98 : vector<8x128xi32>
    %101 = arith.subi %96, %100 : vector<8x128xi32>
    %c4_i32_42 = arith.constant 4 : i32
    %102 = tpu.dynamic_rotate %14 by %c4_i32_42 dim 1 : vector<8x128xi32>, i32 -> vector<8x128xi32>
    %c4_i32_43 = arith.constant 4 : i32
    %103 = tpu.dynamic_rotate %94 by %c4_i32_43 dim 1 : vector<8x128xf32>, i32 -> vector<8x128xf32>
    %c124_i32_44 = arith.constant 124 : i32
    %104 = tpu.dynamic_rotate %94 by %c124_i32_44 dim 1 : vector<8x128xf32>, i32 -> vector<8x128xf32>
    %105 = arith.cmpi eq, %102, %101 : vector<8x128xi32>
    %106 = arith.select %105, %103, %104 : vector<8x128xi1>, vector<8x128xf32>
    %107 = arith.addf %94, %106 : vector<8x128xf32>
    %c8_i32_45 = arith.constant 8 : i32
    %108 = vector.broadcast %c8_i32_45 : i32 to vector<8x128xi32>
    %109 = arith.addi %14, %108 : vector<8x128xi32>
    %c8_i32_46 = arith.constant 8 : i32
    %110 = vector.broadcast %c8_i32_46 : i32 to vector<8x128xi32>
    %111 = arith.andi %14, %110 : vector<8x128xi32>
    %c2_i32_47 = arith.constant 2 : i32
    %112 = vector.broadcast %c2_i32_47 : i32 to vector<8x128xi32>
    %113 = arith.muli %112, %111 : vector<8x128xi32>
    %114 = arith.subi %109, %113 : vector<8x128xi32>
    %c8_i32_48 = arith.constant 8 : i32
    %115 = tpu.dynamic_rotate %14 by %c8_i32_48 dim 1 : vector<8x128xi32>, i32 -> vector<8x128xi32>
    %c8_i32_49 = arith.constant 8 : i32
    %116 = tpu.dynamic_rotate %107 by %c8_i32_49 dim 1 : vector<8x128xf32>, i32 -> vector<8x128xf32>
    %c120_i32_50 = arith.constant 120 : i32
    %117 = tpu.dynamic_rotate %107 by %c120_i32_50 dim 1 : vector<8x128xf32>, i32 -> vector<8x128xf32>
    %118 = arith.cmpi eq, %115, %114 : vector<8x128xi32>
    %119 = arith.select %118, %116, %117 : vector<8x128xi1>, vector<8x128xf32>
    %120 = arith.addf %107, %119 : vector<8x128xf32>
    %121 = tpu.reciprocal %120 {approx = true} : vector<8x128xf32> -> vector<8x128xf32>
    %122 = arith.mulf %120, %121 : vector<8x128xf32>
    %cst_51 = arith.constant 2.000000e+00 : f32
    %123 = vector.broadcast %cst_51 : f32 to vector<8x128xf32>
    %124 = arith.subf %123, %122 : vector<8x128xf32>
    %125 = arith.mulf %121, %124 : vector<8x128xf32>
    %126 = arith.mulf %68, %125 : vector<8x128xf32>
    %c0_52 = arith.constant 0 : index
    %c0_53 = arith.constant 0 : index
    %127 = vector.load %arg6[%c0_52, %c0_53] : memref<8x128xf32, #tpu.memory_space<vmem>>, vector<8x128xf32>
    tpu.vector_store %arg6[%c0_52, %c0_53], %126 {strides = array<i32>} : memref<8x128xf32, #tpu.memory_space<vmem>>, vector<8x128xf32>,
    return
  }
  func.func @transform_0(%arg0: i32) -> (i32, i32) {
    %c0_i32 = arith.constant 0 : i32
    %c0_i32_0 = arith.constant 0 : i32
    return %arg0, %c0_i32 : i32, i32
  }
  func.func @transform_1(%arg0: i32) -> (i32, i32) {
    %c0_i32 = arith.constant 0 : i32
    %c0_i32_0 = arith.constant 0 : i32
    %c0_i32_1 = arith.constant 0 : i32
    return %c0_i32, %c0_i32_0 : i32, i32
  }
  func.func @transform_2(%arg0: i32) -> (i32, i32) {
    %c0_i32 = arith.constant 0 : i32
    %c0_i32_0 = arith.constant 0 : i32
    %c0_i32_1 = arith.constant 0 : i32
    return %c0_i32, %c0_i32_0 : i32, i32
  }
  func.func @transform_3(%arg0: i32) -> (i32, i32) {
    %c0_i32 = arith.constant 0 : i32
    %c0_i32_0 = arith.constant 0 : i32
    %c0_i32_1 = arith.constant 0 : i32
    return %c0_i32, %c0_i32_0 : i32, i32
  }
  func.func @transform_4(%arg0: i32) -> (i32, i32) {
    %c0_i32 = arith.constant 0 : i32
    %c0_i32_0 = arith.constant 0 : i32
    %c0_i32_1 = arith.constant 0 : i32
    return %c0_i32, %c0_i32_0 : i32, i32
  }
  func.func @transform_5(%arg0: i32) -> (i32, i32) {
    %c0_i32 = arith.constant 0 : i32
    %c0_i32_0 = arith.constant 0 : i32
    return %arg0, %c0_i32 : i32, i32
  }
}

</mosaic_0001>

<llo_original>
// kernel: graph_decoder_apply.1
$region0: #{graph_decoder_apply.1}
  #allocation0 [shape = 'u32[]', space=smem, size = 0x4, offset = 0x4, fixed_abs, tag = 'smem constant byte address 0x4 - core index']
  #allocation1 [shape = 'u32[144,128]{1,0:T(1,128)}', space=vmem, size = 0x12000, scoped, tag = 'internal scratch']
  %s0 = inlined_call_operand.vmem [shape: bf16[8,256], index: 0, kind: input, shape index: {}]
  %s1 = inlined_call_operand.hbm [shape: bf16[256,512], index: 1, kind: input, shape index: {}]
  %s2 = inlined_call_operand.vmem [shape: f32[1,512], index: 2, kind: input, shape index: {}]
  %s3 = inlined_call_operand.hbm [shape: bf16[512,128], index: 3, kind: input, shape index: {}]
  %s4 = inlined_call_operand.vmem [shape: f32[1,128], index: 4, kind: input, shape index: {}]
  %s5 = inlined_call_operand.vmem [shape: f32[8,128], index: 5, kind: output, shape index: {}]
  %s6 = sld [smem:[#allocation0]]
  $region38: #{graph_decoder_apply.1} parent=0
    _
  %s8 = ssub.s32 1, %s6
  %s9 = scalar_select 0, %s8, %s6
  $region1: #{graph_decoder_apply.1} parent=0
    #allocation2 [shape = 'u8[262144]{0}', space=vmem, size = 0x40000, scoped, tag = 'input window, operand 1, single buffered']
    #allocation3 [shape = 's32[1]{0}', space=sflag, size = 0x4, scoped, tag = 'scoped memory for graph_decoder_apply.1']
    #allocation4 [shape = 'u8[131072]{0}', space=vmem, size = 0x20000, scoped, tag = 'input window, operand 3, single buffered']
    #allocation5 [shape = 's32[1]{0}', space=sflag, size = 0x4, scoped, tag = 'scoped memory for graph_decoder_apply.1']
    %10 = vsyncpa [#allocation3], 0
    %11 = vsyncpa [#allocation5], 0
    // Predicated region
    $region2: #{graph_decoder_apply.1} parent=1 // pred_check
      _
    $region3: #{graph_decoder_apply.1} parent=1 // pred_check_branch
      %13 = sbr.rel (0) target = $region5
    $region4: #{graph_decoder_apply.1} parent=1 // pred_region
      _
    $region5: #{graph_decoder_apply.1} parent=1 // pred_fallthru
      _
    // Predicated region
    $region6: #{graph_decoder_apply.1} parent=1 // pred_check
      _
    $region7: #{graph_decoder_apply.1} parent=1 // pred_check_branch
      %15 = sbr.rel (0) target = $region9
    $region8: #{graph_decoder_apply.1} parent=1 // pred_region
      %s17 = ssub.s32 8192, 8192
      %18 = vsyncadd [#allocation3], %s17
      %s19 = sshll.u32 [#allocation2], 4
      %s20 = int_to_ptr.vmem [resolvable:$true] %s19
      %25 = dma.hbm_to_vmem [thread:$0]  %s1, 8192, %s20, [#allocation3], 256, 256, 16
    $region9: #{graph_decoder_apply.1} parent=1 // pred_fallthru
      _
    // Predicated region
    $region10: #{graph_decoder_apply.1} parent=1 // pred_check
      _
    $region11: #{graph_decoder_apply.1} parent=1 // pred_check_branch
      %27 = sbr.rel (0) target = $region13
    $region12: #{graph_decoder_apply.1} parent=1 // pred_region
      _
    $region13: #{graph_decoder_apply.1} parent=1 // pred_fallthru
      _
    // Predicated region
    $region14: #{graph_decoder_apply.1} parent=1 // pred_check
      _
    $region15: #{graph_decoder_apply.1} parent=1 // pred_check_branch
      %29 = sbr.rel (0) target = $region17
    $region16: #{graph_decoder_apply.1} parent=1 // pred_region
      %s31 = ssub.s32 4096, 4096
      %32 = vsyncadd [#allocation5], %s31
      %s33 = sshll.u32 [#allocation4], 4
      %s34 = int_to_ptr.vmem [resolvable:$true] %s33
      %39 = dma.hbm_to_vmem [thread:$0]  %s3, 4096, %s34, [#allocation5], 64, 64, 4
    $region17: #{graph_decoder_apply.1} parent=1 // pred_fallthru
      _
    // Predicated region
    $region18: #{graph_decoder_apply.1} parent=1 // pred_check
      _
    $region19: #{graph_decoder_apply.1} parent=1 // pred_check_branch
      %41 = sbr.rel (0) target = $region21
    $region20: #{graph_decoder_apply.1} parent=1 // pred_region
      _
    $region21: #{graph_decoder_apply.1} parent=1 // pred_fallthru
      _
    // Predicated region
    $region22: #{graph_decoder_apply.1} parent=1 // pred_check
      _
    $region23: #{graph_decoder_apply.1} parent=1 // pred_check_branch
      %43 = sbr.rel (0) target = $region25
    $region24: #{graph_decoder_apply.1} parent=1 // pred_region
      %44 = dma.done [#allocation3], 8192
    $region25: #{graph_decoder_apply.1} parent=1 // pred_fallthru
      _
    // Predicated region
    $region26: #{graph_decoder_apply.1} parent=1 // pred_check
      _
    $region27: #{graph_decoder_apply.1} parent=1 // pred_check_branch
      %46 = sbr.rel (0) target = $region29
    $region28: #{graph_decoder_apply.1} parent=1 // pred_region
      %47 = dma.done [#allocation5], 4096
    $region29: #{graph_decoder_apply.1} parent=1 // pred_fallthru
      _
    %v49 = vld [vmem:[%s0] sm:$0xff]
    %v50 = vld [vmem:[#allocation2] sm:$0xff]
    %v51 = vld [vmem:[#allocation2 + $0x8] sm:$0xff]
    %v52 = vld [vmem:[#allocation2 + $0x10] sm:$0xff]
    %v53 = vld [vmem:[#allocation2 + $0x18] sm:$0xff]
    %v54 = vld [vmem:[#allocation2 + $0x20] sm:$0xff]
    %v55 = vld [vmem:[#allocation2 + $0x28] sm:$0xff]
    %v56 = vld [vmem:[#allocation2 + $0x30] sm:$0xff]
    %v57 = vld [vmem:[#allocation2 + $0x38] sm:$0xff]
    %v58 = vld [vmem:[#allocation2 + $0x40] sm:$0xff]
    %v59 = vld [vmem:[#allocation2 + $0x48] sm:$0xff]
    %v60 = vld [vmem:[#allocation2 + $0x50] sm:$0xff]
    %v61 = vld [vmem:[#allocation2 + $0x58] sm:$0xff]
    %v62 = vld [vmem:[#allocation2 + $0x60] sm:$0xff]
    %v63 = vld [vmem:[#allocation2 + $0x68] sm:$0xff]
    %v64 = vld [vmem:[#allocation2 + $0x70] sm:$0xff]
    %v65 = vld [vmem:[#allocation2 + $0x78] sm:$0xff]
    %v66 = vld [vmem:[#allocation2 + $0x80] sm:$0xff]
    %v67 = vld [vmem:[#allocation2 + $0x88] sm:$0xff]
    %v68 = vld [vmem:[#allocation2 + $0x90] sm:$0xff]
    %v69 = vld [vmem:[#allocation2 + $0x98] sm:$0xff]
    %v70 = vld [vmem:[#allocation2 + $0xa0] sm:$0xff]
    %v71 = vld [vmem:[#allocation2 + $0xa8] sm:$0xff]
    %v72 = vld [vmem:[#allocation2 + $0xb0] sm:$0xff]
    %v73 = vld [vmem:[#allocation2 + $0xb8] sm:$0xff]
    %v74 = vld [vmem:[#allocation2 + $0xc0] sm:$0xff]
    %v75 = vld [vmem:[#allocation2 + $0xc8] sm:$0xff]
    %v76 = vld [vmem:[#allocation2 + $0xd0] sm:$0xff]
    %v77 = vld [vmem:[#allocation2 + $0xd8] sm:$0xff]
    %v78 = vld [vmem:[#allocation2 + $0xe0] sm:$0xff]
    %v79 = vld [vmem:[#allocation2 + $0xe8] sm:$0xff]
    %v80 = vld [vmem:[#allocation2 + $0xf0] sm:$0xff]
    %v81 = vld [vmem:[#allocation2 + $0xf8] sm:$0xff]
    %v82 = vld [vmem:[#allocation2 + $0x100] sm:$0xff]
    %v83 = vld [vmem:[#allocation2 + $0x108] sm:$0xff]
    %v84 = vld [vmem:[#allocation2 + $0x110] sm:$0xff]
    %v85 = vld [vmem:[#allocation2 + $0x118] sm:$0xff]
    %v86 = vld [vmem:[#allocation2 + $0x120] sm:$0xff]
    %v87 = vld [vmem:[#allocation2 + $0x128] sm:$0xff]
    %v88 = vld [vmem:[#allocation2 + $0x130] sm:$0xff]
    %v89 = vld [vmem:[#allocation2 + $0x138] sm:$0xff]
    %v90 = vld [vmem:[#allocation2 + $0x140] sm:$0xff]
    %v91 = vld [vmem:[#allocation2 + $0x148] sm:$0xff]
    %v92 = vld [vmem:[#allocation2 + $0x150] sm:$0xff]
    %v93 = vld [vmem:[#allocation2 + $0x158] sm:$0xff]
    %v94 = vld [vmem:[#allocation2 + $0x160] sm:$0xff]
    %v95 = vld [vmem:[#allocation2 + $0x168] sm:$0xff]
    %v96 = vld [vmem:[#allocation2 + $0x170] sm:$0xff]
    %v97 = vld [vmem:[#allocation2 + $0x178] sm:$0xff]
    %v98 = vld [vmem:[#allocation2 + $0x180] sm:$0xff]
    %v99 = vld [vmem:[#allocation2 + $0x188] sm:$0xff]
    %v100 = vld [vmem:[#allocation2 + $0x190] sm:$0xff]
    %v101 = vld [vmem:[#allocation2 + $0x198] sm:$0xff]
    %v102 = vld [vmem:[#allocation2 + $0x1a0] sm:$0xff]
    %v103 = vld [vmem:[#allocation2 + $0x1a8] sm:$0xff]
    %v104 = vld [vmem:[#allocation2 + $0x1b0] sm:$0xff]
    %v105 = vld [vmem:[#allocation2 + $0x1b8] sm:$0xff]
    %v106 = vld [vmem:[#allocation2 + $0x1c0] sm:$0xff]
    %v107 = vld [vmem:[#allocation2 + $0x1c8] sm:$0xff]
    %v108 = vld [vmem:[#allocation2 + $0x1d0] sm:$0xff]
    %v109 = vld [vmem:[#allocation2 + $0x1d8] sm:$0xff]
    %v110 = vld [vmem:[#allocation2 + $0x1e0] sm:$0xff]
    %v111 = vld [vmem:[#allocation2 + $0x1e8] sm:$0xff]
    %v112 = vld [vmem:[#allocation2 + $0x1f0] sm:$0xff]
    %v113 = vld [vmem:[#allocation2 + $0x1f8] sm:$0xff]
    %v114 = vld [vmem:[%s2] sm:$0xf]
    %v116 = vlaneseq
    %v117 = vshrl.u32 %v116, 7
    %v118 = vsub.s32 0, %v117
    %v119 = vrot.slane %v114, %v118
    %v120 = vlaneseq
    %v121 = vshrl.u32 %v120, 7
    %v122 = vsub.s32 1, %v121
    %v123 = vrot.slane %v114, %v122
    %v124 = vlaneseq
    %v125 = vshrl.u32 %v124, 7
    %v126 = vsub.s32 2, %v125
    %v127 = vrot.slane %v114, %v126
    %v128 = vlaneseq
    %v129 = vshrl.u32 %v128, 7
    %v130 = vsub.s32 3, %v129
    %v131 = vrot.slane %v114, %v130
    %v137 = vunpack.c.l.b16 %v49
    %v138 = vunpack.c.h.b16 %v49
    %v139 = vpack.c.b16 %v137, %v137
    %v140 = vpack.c.b16 %v138, %v138
    %v207 = vunpack.c.l.b16 %v50
    %v208 = vunpack.c.h.b16 %v50
    %v209 = vunpack.c.l.b16 %v51
    %v210 = vunpack.c.h.b16 %v51
    %v211 = vunpack.c.l.b16 %v52
    %v212 = vunpack.c.h.b16 %v52
    %v213 = vunpack.c.l.b16 %v53
    %v214 = vunpack.c.h.b16 %v53
    %v215 = vunpack.c.l.b16 %v54
    %v216 = vunpack.c.h.b16 %v54
    %v217 = vunpack.c.l.b16 %v55
    %v218 = vunpack.c.h.b16 %v55
    %v219 = vunpack.c.l.b16 %v56
    %v220 = vunpack.c.h.b16 %v56
    %v221 = vunpack.c.l.b16 %v57
    %v222 = vunpack.c.h.b16 %v57
    %v223 = vunpack.c.l.b16 %v58
    %v224 = vunpack.c.h.b16 %v58
    %v225 = vunpack.c.l.b16 %v59
    %v226 = vunpack.c.h.b16 %v59
    %v227 = vunpack.c.l.b16 %v60
    %v228 = vunpack.c.h.b16 %v60
    %v229 = vunpack.c.l.b16 %v61
    %v230 = vunpack.c.h.b16 %v61
    %v231 = vunpack.c.l.b16 %v62
    %v232 = vunpack.c.h.b16 %v62
    %v233 = vunpack.c.l.b16 %v63
    %v234 = vunpack.c.h.b16 %v63
    %v235 = vunpack.c.l.b16 %v64
    %v236 = vunpack.c.h.b16 %v64
    %v237 = vunpack.c.l.b16 %v65
    %v238 = vunpack.c.h.b16 %v65
    %v239 = vunpack.c.l.b16 %v66
    %v240 = vunpack.c.h.b16 %v66
    %v241 = vunpack.c.l.b16 %v67
    %v242 = vunpack.c.h.b16 %v67
    %v243 = vunpack.c.l.b16 %v68
    %v244 = vunpack.c.h.b16 %v68
    %v245 = vunpack.c.l.b16 %v69
    %v246 = vunpack.c.h.b16 %v69
    %v247 = vunpack.c.l.b16 %v70
    %v248 = vunpack.c.h.b16 %v70
    %v249 = vunpack.c.l.b16 %v71
    %v250 = vunpack.c.h.b16 %v71
    %v251 = vunpack.c.l.b16 %v72
    %v252 = vunpack.c.h.b16 %v72
    %v253 = vunpack.c.l.b16 %v73
    %v254 = vunpack.c.h.b16 %v73
    %v255 = vunpack.c.l.b16 %v74
    %v256 = vunpack.c.h.b16 %v74
    %v257 = vunpack.c.l.b16 %v75
    %v258 = vunpack.c.h.b16 %v75
    %v259 = vunpack.c.l.b16 %v76
    %v260 = vunpack.c.h.b16 %v76
    %v261 = vunpack.c.l.b16 %v77
    %v262 = vunpack.c.h.b16 %v77
    %v263 = vunpack.c.l.b16 %v78
    %v264 = vunpack.c.h.b16 %v78
    %v265 = vunpack.c.l.b16 %v79
    %v266 = vunpack.c.h.b16 %v79
    %v267 = vunpack.c.l.b16 %v80
    %v268 = vunpack.c.h.b16 %v80
    %v269 = vunpack.c.l.b16 %v81
    %v270 = vunpack.c.h.b16 %v81
    %v271 = vunpack.c.l.b16 %v82
    %v272 = vunpack.c.h.b16 %v82
    %v273 = vunpack.c.l.b16 %v83
    %v274 = vunpack.c.h.b16 %v83
    %v275 = vunpack.c.l.b16 %v84
    %v276 = vunpack.c.h.b16 %v84
    %v277 = vunpack.c.l.b16 %v85
    %v278 = vunpack.c.h.b16 %v85
    %v279 = vunpack.c.l.b16 %v86
    %v280 = vunpack.c.h.b16 %v86
    %v281 = vunpack.c.l.b16 %v87
    %v282 = vunpack.c.h.b16 %v87
    %v283 = vunpack.c.l.b16 %v88
    %v284 = vunpack.c.h.b16 %v88
    %v285 = vunpack.c.l.b16 %v89
    %v286 = vunpack.c.h.b16 %v89
    %v287 = vunpack.c.l.b16 %v90
    %v288 = vunpack.c.h.b16 %v90
    %v289 = vunpack.c.l.b16 %v91
    %v290 = vunpack.c.h.b16 %v91
    %v291 = vunpack.c.l.b16 %v92
    %v292 = vunpack.c.h.b16 %v92
    %v293 = vunpack.c.l.b16 %v93
    %v294 = vunpack.c.h.b16 %v93
    %v295 = vunpack.c.l.b16 %v94
    %v296 = vunpack.c.h.b16 %v94
    %v297 = vunpack.c.l.b16 %v95
    %v298 = vunpack.c.h.b16 %v95
    %v299 = vunpack.c.l.b16 %v96
    %v300 = vunpack.c.h.b16 %v96
    %v301 = vunpack.c.l.b16 %v97
    %v302 = vunpack.c.h.b16 %v97
    %v303 = vunpack.c.l.b16 %v98
    %v304 = vunpack.c.h.b16 %v98
    %v305 = vunpack.c.l.b16 %v99
    %v306 = vunpack.c.h.b16 %v99
    %v307 = vunpack.c.l.b16 %v100
    %v308 = vunpack.c.h.b16 %v100
    %v309 = vunpack.c.l.b16 %v101
    %v310 = vunpack.c.h.b16 %v101
    %v311 = vunpack.c.l.b16 %v102
    %v312 = vunpack.c.h.b16 %v102
    %v313 = vunpack.c.l.b16 %v103
    %v314 = vunpack.c.h.b16 %v103
    %v315 = vunpack.c.l.b16 %v104
    %v316 = vunpack.c.h.b16 %v104
    %v317 = vunpack.c.l.b16 %v105
    %v318 = vunpack.c.h.b16 %v105
    %v319 = vunpack.c.l.b16 %v106
    %v320 = vunpack.c.h.b16 %v106
    %v321 = vunpack.c.l.b16 %v107
    %v322 = vunpack.c.h.b16 %v107
    %v323 = vunpack.c.l.b16 %v108
    %v324 = vunpack.c.h.b16 %v108
    %v325 = vunpack.c.l.b16 %v109
    %v326 = vunpack.c.h.b16 %v109
    %v327 = vunpack.c.l.b16 %v110
    %v328 = vunpack.c.h.b16 %v110
    %v329 = vunpack.c.l.b16 %v111
    %v330 = vunpack.c.h.b16 %v111
    %v331 = vunpack.c.l.b16 %v112
    %v332 = vunpack.c.h.b16 %v112
    %v333 = vunpack.c.l.b16 %v113
    %v334 = vunpack.c.h.b16 %v113
    %v335 = vpack.c.b16 %v211, %v207
    %v336 = vpack.c.b16 %v212, %v208
    %v337 = vpack.c.b16 %v213, %v209
    %v338 = vpack.c.b16 %v214, %v210
    %v339 = vpack.c.b16 %v219, %v215
    %v340 = vpack.c.b16 %v220, %v216
    %v341 = vpack.c.b16 %v221, %v217
    %v342 = vpack.c.b16 %v222, %v218
    %v343 = vpack.c.b16 %v227, %v223
    %v344 = vpack.c.b16 %v228, %v224
    %v345 = vpack.c.b16 %v229, %v225
    %v346 = vpack.c.b16 %v230, %v226
    %v347 = vpack.c.b16 %v235, %v231
    %v348 = vpack.c.b16 %v236, %v232
    %v349 = vpack.c.b16 %v237, %v233
    %v350 = vpack.c.b16 %v238, %v234
    %v351 = vpack.c.b16 %v243, %v239
    %v352 = vpack.c.b16 %v244, %v240
    %v353 = vpack.c.b16 %v245, %v241
    %v354 = vpack.c.b16 %v246, %v242
    %v355 = vpack.c.b16 %v251, %v247
    %v356 = vpack.c.b16 %v252, %v248
    %v357 = vpack.c.b16 %v253, %v249
    %v358 = vpack.c.b16 %v254, %v250
    %v359 = vpack.c.b16 %v259, %v255
    %v360 = vpack.c.b16 %v260, %v256
    %v361 = vpack.c.b16 %v261, %v257
    %v362 = vpack.c.b16 %v262, %v258
    %v363 = vpack.c.b16 %v267, %v263
    %v364 = vpack.c.b16 %v268, %v264
    %v365 = vpack.c.b16 %v269, %v265
    %v366 = vpack.c.b16 %v270, %v266
    %v367 = vpack.c.b16 %v275, %v271
    %v368 = vpack.c.b16 %v276, %v272
    %v369 = vpack.c.b16 %v277, %v273
    %v370 = vpack.c.b16 %v278, %v274
    %v371 = vpack.c.b16 %v283, %v279
    %v372 = vpack.c.b16 %v284, %v280
    %v373 = vpack.c.b16 %v285, %v281
    %v374 = vpack.c.b16 %v286, %v282
    %v375 = vpack.c.b16 %v291, %v287
    %v376 = vpack.c.b16 %v292, %v288
    %v377 = vpack.c.b16 %v293, %v289
    %v378 = vpack.c.b16 %v294, %v290
    %v379 = vpack.c.b16 %v299, %v295
    %v380 = vpack.c.b16 %v300, %v296
    %v381 = vpack.c.b16 %v301, %v297
    %v382 = vpack.c.b16 %v302, %v298
    %v383 = vpack.c.b16 %v307, %v303
    %v384 = vpack.c.b16 %v308, %v304
    %v385 = vpack.c.b16 %v309, %v305
    %v386 = vpack.c.b16 %v310, %v306
    %v387 = vpack.c.b16 %v315, %v311
    %v388 = vpack.c.b16 %v316, %v312
    %v389 = vpack.c.b16 %v317, %v313
    %v390 = vpack.c.b16 %v318, %v314
    %v391 = vpack.c.b16 %v323, %v319
    %v392 = vpack.c.b16 %v324, %v320
    %v393 = vpack.c.b16 %v325, %v321
    %v394 = vpack.c.b16 %v326, %v322
    %v395 = vpack.c.b16 %v331, %v327
    %v396 = vpack.c.b16 %v332, %v328
    %v397 = vpack.c.b16 %v333, %v329
    %v398 = vpack.c.b16 %v334, %v330
    %463 = vmatprep.subr.bf16.mxu0 %v336
    %464 = vmatpush1.bf16.msra.mxu0 %v335
    %465 = vmatprep.subr.bf16.mxu0 %v340
    %466 = vmatpush1.bf16.msra.mxu0 %v339
    %467 = vmatprep.subr.bf16.mxu0 %v344
    %468 = vmatpush1.bf16.msra.mxu0 %v343
    %469 = vmatprep.subr.bf16.mxu0 %v348
    %470 = vmatpush1.bf16.msra.mxu0 %v347
    %471 = vmatprep.subr.bf16.mxu0 %v352
    %472 = vmatpush1.bf16.msra.mxu0 %v351
    %473 = vmatprep.subr.bf16.mxu0 %v356
    %474 = vmatpush1.bf16.msra.mxu0 %v355
    %475 = vmatprep.subr.bf16.mxu0 %v360
    %476 = vmatpush1.bf16.msra.mxu0 %v359
    %477 = vmatprep.subr.bf16.mxu0 %v364
    %478 = vmatpush1.bf16.msra.mxu0 %v363
    %479 = vmatprep.subr.bf16.mxu0 %v368
    %480 = vmatpush1.bf16.msra.mxu0 %v367
    %481 = vmatprep.subr.bf16.mxu0 %v372
    %482 = vmatpush1.bf16.msra.mxu0 %v371
    %483 = vmatprep.subr.bf16.mxu0 %v376
    %484 = vmatpush1.bf16.msra.mxu0 %v375
    %485 = vmatprep.subr.bf16.mxu0 %v380
    %486 = vmatpush1.bf16.msra.mxu0 %v379
    %487 = vmatprep.subr.bf16.mxu0 %v384
    %488 = vmatpush1.bf16.msra.mxu0 %v383
    %489 = vmatprep.subr.bf16.mxu0 %v388
    %490 = vmatpush1.bf16.msra.mxu0 %v387
    %491 = vmatprep.subr.bf16.mxu0 %v392
    %492 = vmatpush1.bf16.msra.mxu0 %v391
    %493 = vmatprep.subr.bf16.mxu0 %v396
    %494 = vmatpush1.bf16.msra.mxu0 %v395
    %495 = vmatprep.mubr.bf16.mxu0 %v140
    %496 = vmatmul.mubr.bf16.gmra.mrb[0].mxu0 %v139
    %v497 = vpop.f32.mrb[0].mxu0
    %v498 = vadd.f32 %v119, %v497
    %v499 = vpop.f32.mrb[0].mxu0
    %v500 = vadd.f32 %v123, %v499
    %v501 = vpop.f32.mrb[0].mxu0
    %v502 = vpop.f32.mrb[0].mxu0
    %503 = vdwg.mxu0
    %504 = vmatprep.subr.bf16.mxu0 %v338
    %505 = vmatpush1.bf16.msra.mxu0 %v337
    %506 = vmatprep.subr.bf16.mxu0 %v342
    %507 = vmatpush1.bf16.msra.mxu0 %v341
    %508 = vmatprep.subr.bf16.mxu0 %v346
    %509 = vmatpush1.bf16.msra.mxu0 %v345
    %510 = vmatprep.subr.bf16.mxu0 %v350
    %511 = vmatpush1.bf16.msra.mxu0 %v349
    %512 = vmatprep.subr.bf16.mxu0 %v354
    %513 = vmatpush1.bf16.msra.mxu0 %v353
    %514 = vmatprep.subr.bf16.mxu0 %v358
    %515 = vmatpush1.bf16.msra.mxu0 %v357
    %516 = vmatprep.subr.bf16.mxu0 %v362
    %517 = vmatpush1.bf16.msra.mxu0 %v361
    %518 = vmatprep.subr.bf16.mxu0 %v366
    %519 = vmatpush1.bf16.msra.mxu0 %v365
    %520 = vmatprep.subr.bf16.mxu0 %v370
    %521 = vmatpush1.bf16.msra.mxu0 %v369
    %522 = vmatprep.subr.bf16.mxu0 %v374
    %523 = vmatpush1.bf16.msra.mxu0 %v373
    %524 = vmatprep.subr.bf16.mxu0 %v378
    %525 = vmatpush1.bf16.msra.mxu0 %v377
    %526 = vmatprep.subr.bf16.mxu0 %v382
    %527 = vmatpush1.bf16.msra.mxu0 %v381
    %528 = vmatprep.subr.bf16.mxu0 %v386
    %529 = vmatpush1.bf16.msra.mxu0 %v385
    %530 = vmatprep.subr.bf16.mxu0 %v390
    %531 = vmatpush1.bf16.msra.mxu0 %v389
    %532 = vmatprep.subr.bf16.mxu0 %v394
    %533 = vmatpush1.bf16.msra.mxu0 %v393
    %534 = vmatprep.subr.bf16.mxu0 %v398
    %535 = vmatpush1.bf16.msra.mxu0 %v397
    %536 = vmatprep.mubr.bf16.mxu0 %v140
    %537 = vmatmul.mubr.bf16.gmra.mrb[0].mxu0 %v139
    %v538 = vpop.f32.mrb[0].mxu0
    %v539 = vadd.f32 %v127, %v538
    %v540 = vpop.f32.mrb[0].mxu0
    %v541 = vadd.f32 %v131, %v540
    %v542 = vpop.f32.mrb[0].mxu0
    %v543 = vpop.f32.mrb[0].mxu0
    %544 = vdwg.mxu0
    %v545 = vmax.f32 %v498, 0.0
    %v546 = vmax.f32 %v500, 0.0
    %v547 = vmax.f32 %v539, 0.0
    %v548 = vmax.f32 %v541, 0.0
    %v549 = vpack.c.bf16 %v545, %v545
    %v550 = vpack.c.bf16 %v546, %v546
    %v551 = vpack.c.bf16 %v547, %v547
    %v552 = vpack.c.bf16 %v548, %v548
    %v553 = vld [vmem:[#allocation4] sm:$0xf]
    %v554 = vld [vmem:[#allocation4 + $0x4] sm:$0xf]
    %v555 = vld [vmem:[#allocation4 + $0x8] sm:$0xf]
    %v556 = vld [vmem:[#allocation4 + $0xc] sm:$0xf]
    %v557 = vld [vmem:[#allocation4 + $0x10] sm:$0xf]
    %v558 = vld [vmem:[#allocation4 + $0x14] sm:$0xf]
    %v559 = vld [vmem:[#allocation4 + $0x18] sm:$0xf]
    %v560 = vld [vmem:[#allocation4 + $0x1c] sm:$0xf]
    %v561 = vld [vmem:[#allocation4 + $0x20] sm:$0xf]
    %v562 = vld [vmem:[#allocation4 + $0x24] sm:$0xf]
    %v563 = vld [vmem:[#allocation4 + $0x28] sm:$0xf]
    %v564 = vld [vmem:[#allocation4 + $0x2c] sm:$0xf]
    %v565 = vld [vmem:[#allocation4 + $0x30] sm:$0xf]
    %v566 = vld [vmem:[#allocation4 + $0x34] sm:$0xf]
    %v567 = vld [vmem:[#allocation4 + $0x38] sm:$0xf]
    %v568 = vld [vmem:[#allocation4 + $0x3c] sm:$0xf]
    %v569 = vld [vmem:[#allocation4 + $0x40] sm:$0xf]
    %v570 = vld [vmem:[#allocation4 + $0x44] sm:$0xf]
    %v571 = vld [vmem:[#allocation4 + $0x48] sm:$0xf]
    %v572 = vld [vmem:[#allocation4 + $0x4c] sm:$0xf]
    %v573 = vld [vmem:[#allocation4 + $0x50] sm:$0xf]
    %v574 = vld [vmem:[#allocation4 + $0x54] sm:$0xf]
    %v575 = vld [vmem:[#allocation4 + $0x58] sm:$0xf]
    %v576 = vld [vmem:[#allocation4 + $0x5c] sm:$0xf]
    %v577 = vld [vmem:[#allocation4 + $0x60] sm:$0xf]
    %v578 = vld [vmem:[#allocation4 + $0x64] sm:$0xf]
    %v579 = vld [vmem:[#allocation4 + $0x68] sm:$0xf]
    %v580 = vld [vmem:[#allocation4 + $0x6c] sm:$0xf]
    %v581 = vld [vmem:[#allocation4 + $0x70] sm:$0xf]
    %v582 = vld [vmem:[#allocation4 + $0x74] sm:$0xf]
    %v583 = vld [vmem:[#allocation4 + $0x78] sm:$0xf]
    %v584 = vld [vmem:[#allocation4 + $0x7c] sm:$0xf]
    %v585 = vld [vmem:[#allocation4 + $0x80] sm:$0xf]
    %v586 = vld [vmem:[#allocation4 + $0x84] sm:$0xf]
    %v587 = vld [vmem:[#allocation4 + $0x88] sm:$0xf]
    %v588 = vld [vmem:[#allocation4 + $0x8c] sm:$0xf]
    %v589 = vld [vmem:[#allocation4 + $0x90] sm:$0xf]
    %v590 = vld [vmem:[#allocation4 + $0x94] sm:$0xf]
    %v591 = vld [vmem:[#allocation4 + $0x98] sm:$0xf]
    %v592 = vld [vmem:[#allocation4 + $0x9c] sm:$0xf]
    %v593 = vld [vmem:[#allocation4 + $0xa0] sm:$0xf]
    %v594 = vld [vmem:[#allocation4 + $0xa4] sm:$0xf]
    %v595 = vld [vmem:[#allocation4 + $0xa8] sm:$0xf]
    %v596 = vld [vmem:[#allocation4 + $0xac] sm:$0xf]
    %v597 = vld [vmem:[#allocation4 + $0xb0] sm:$0xf]
    %v598 = vld [vmem:[#allocation4 + $0xb4] sm:$0xf]
    %v599 = vld [vmem:[#allocation4 + $0xb8] sm:$0xf]
    %v600 = vld [vmem:[#allocation4 + $0xbc] sm:$0xf]
    %v601 = vld [vmem:[#allocation4 + $0xc0] sm:$0xf]
    %v602 = vld [vmem:[#allocation4 + $0xc4] sm:$0xf]
    %v603 = vld [vmem:[#allocation4 + $0xc8] sm:$0xf]
    %v604 = vld [vmem:[#allocation4 + $0xcc] sm:$0xf]
    %v605 = vld [vmem:[#allocation4 + $0xd0] sm:$0xf]
    %v606 = vld [vmem:[#allocation4 + $0xd4] sm:$0xf]
    %v607 = vld [vmem:[#allocation4 + $0xd8] sm:$0xf]
    %v608 = vld [vmem:[#allocation4 + $0xdc] sm:$0xf]
    %v609 = vld [vmem:[#allocation4 + $0xe0] sm:$0xf]
    %v610 = vld [vmem:[#allocation4 + $0xe4] sm:$0xf]
    %v611 = vld [vmem:[#allocation4 + $0xe8] sm:$0xf]
    %v612 = vld [vmem:[#allocation4 + $0xec] sm:$0xf]
    %v613 = vld [vmem:[#allocation4 + $0xf0] sm:$0xf]
    %v614 = vld [vmem:[#allocation4 + $0xf4] sm:$0xf]
    %v615 = vld [vmem:[#allocation4 + $0xf8] sm:$0xf]
    %v616 = vld [vmem:[#allocation4 + $0xfc] sm:$0xf]
    %v617 = vld [vmem:[%s4] sm:$0x1]
    %v619 = vlaneseq
    %v620 = vshrl.u32 %v619, 7
    %v621 = vsub.s32 0, %v620
    %v622 = vrot.slane %v617, %v621
    %v688 = vunpack.c.l.b16 %v553
    %v689 = vunpack.c.l.b16 %v554
    %v690 = vunpack.c.l.b16 %v555
    %v691 = vunpack.c.l.b16 %v556
    %v692 = vunpack.c.l.b16 %v557
    %v693 = vunpack.c.l.b16 %v558
    %v694 = vunpack.c.l.b16 %v559
    %v695 = vunpack.c.l.b16 %v560
    %v696 = vunpack.c.l.b16 %v561
    %v697 = vunpack.c.l.b16 %v562
    %v698 = vunpack.c.l.b16 %v563
    %v699 = vunpack.c.l.b16 %v564
    %v700 = vunpack.c.l.b16 %v565
    %v701 = vunpack.c.l.b16 %v566
    %v702 = vunpack.c.l.b16 %v567
    %v703 = vunpack.c.l.b16 %v568
    %v704 = vunpack.c.l.b16 %v569
    %v705 = vunpack.c.l.b16 %v570
    %v706 = vunpack.c.l.b16 %v571
    %v707 = vunpack.c.l.b16 %v572
    %v708 = vunpack.c.l.b16 %v573
    %v709 = vunpack.c.l.b16 %v574
    %v710 = vunpack.c.l.b16 %v575
    %v711 = vunpack.c.l.b16 %v576
    %v712 = vunpack.c.l.b16 %v577
    %v713 = vunpack.c.l.b16 %v578
    %v714 = vunpack.c.l.b16 %v579
    %v715 = vunpack.c.l.b16 %v580
    %v716 = vunpack.c.l.b16 %v581
    %v717 = vunpack.c.l.b16 %v582
    %v718 = vunpack.c.l.b16 %v583
    %v719 = vunpack.c.l.b16 %v584
    %v720 = vunpack.c.l.b16 %v585
    %v721 = vunpack.c.l.b16 %v586
    %v722 = vunpack.c.l.b16 %v587
    %v723 = vunpack.c.l.b16 %v588
    %v724 = vunpack.c.l.b16 %v589
    %v725 = vunpack.c.l.b16 %v590
    %v726 = vunpack.c.l.b16 %v591
    %v727 = vunpack.c.l.b16 %v592
    %v728 = vunpack.c.l.b16 %v593
    %v729 = vunpack.c.l.b16 %v594
    %v730 = vunpack.c.l.b16 %v595
    %v731 = vunpack.c.l.b16 %v596
    %v732 = vunpack.c.l.b16 %v597
    %v733 = vunpack.c.l.b16 %v598
    %v734 = vunpack.c.l.b16 %v599
    %v735 = vunpack.c.l.b16 %v600
    %v736 = vunpack.c.l.b16 %v601
    %v737 = vunpack.c.l.b16 %v602
    %v738 = vunpack.c.l.b16 %v603
    %v739 = vunpack.c.l.b16 %v604
    %v740 = vunpack.c.l.b16 %v605
    %v741 = vunpack.c.l.b16 %v606
    %v742 = vunpack.c.l.b16 %v607
    %v743 = vunpack.c.l.b16 %v608
    %v744 = vunpack.c.l.b16 %v609
    %v745 = vunpack.c.l.b16 %v610
    %v746 = vunpack.c.l.b16 %v611
    %v747 = vunpack.c.l.b16 %v612
    %v748 = vunpack.c.l.b16 %v613
    %v749 = vunpack.c.l.b16 %v614
    %v750 = vunpack.c.l.b16 %v615
    %v751 = vunpack.c.l.b16 %v616
    %v752 = vpack.c.b16 %v689, %v688
    %v753 = vpack.c.b16 %v691, %v690
    %v754 = vpack.c.b16 %v693, %v692
    %v755 = vpack.c.b16 %v695, %v694
    %v756 = vpack.c.b16 %v697, %v696
    %v757 = vpack.c.b16 %v699, %v698
    %v758 = vpack.c.b16 %v701, %v700
    %v759 = vpack.c.b16 %v703, %v702
    %v760 = vpack.c.b16 %v705, %v704
    %v761 = vpack.c.b16 %v707, %v706
    %v762 = vpack.c.b16 %v709, %v708
    %v763 = vpack.c.b16 %v711, %v710
    %v764 = vpack.c.b16 %v713, %v712
    %v765 = vpack.c.b16 %v715, %v714
    %v766 = vpack.c.b16 %v717, %v716
    %v767 = vpack.c.b16 %v719, %v718
    %v768 = vpack.c.b16 %v721, %v720
    %v769 = vpack.c.b16 %v723, %v722
    %v770 = vpack.c.b16 %v725, %v724
    %v771 = vpack.c.b16 %v727, %v726
    %v772 = vpack.c.b16 %v729, %v728
    %v773 = vpack.c.b16 %v731, %v730
    %v774 = vpack.c.b16 %v733, %v732
    %v775 = vpack.c.b16 %v735, %v734
    %v776 = vpack.c.b16 %v737, %v736
    %v777 = vpack.c.b16 %v739, %v738
    %v778 = vpack.c.b16 %v741, %v740
    %v779 = vpack.c.b16 %v743, %v742
    %v780 = vpack.c.b16 %v745, %v744
    %v781 = vpack.c.b16 %v747, %v746
    %v782 = vpack.c.b16 %v749, %v748
    %v783 = vpack.c.b16 %v751, %v750
    %816 = vmatprep.subr.bf16.mxu0 0
    %817 = vmatpush1.bf16.msra.mxu0 %v752
    %818 = vmatprep.subr.bf16.mxu0 0
    %819 = vmatpush1.bf16.msra.mxu0 %v753
    %820 = vmatprep.subr.bf16.mxu0 0
    %821 = vmatpush1.bf16.msra.mxu0 %v754
    %822 = vmatprep.subr.bf16.mxu0 0
    %823 = vmatpush1.bf16.msra.mxu0 %v755
    %824 = vmatprep.subr.bf16.mxu0 0
    %825 = vmatpush1.bf16.msra.mxu0 %v756
    %826 = vmatprep.subr.bf16.mxu0 0
    %827 = vmatpush1.bf16.msra.mxu0 %v757
    %828 = vmatprep.subr.bf16.mxu0 0
    %829 = vmatpush1.bf16.msra.mxu0 %v758
    %830 = vmatprep.subr.bf16.mxu0 0
    %831 = vmatpush1.bf16.msra.mxu0 %v759
    %832 = vmatprep.subr.bf16.mxu0 0
    %833 = vmatpush1.bf16.msra.mxu0 %v760
    %834 = vmatprep.subr.bf16.mxu0 0
    %835 = vmatpush1.bf16.msra.mxu0 %v761
    %836 = vmatprep.subr.bf16.mxu0 0
    %837 = vmatpush1.bf16.msra.mxu0 %v762
    %838 = vmatprep.subr.bf16.mxu0 0
    %839 = vmatpush1.bf16.msra.mxu0 %v763
    %840 = vmatprep.subr.bf16.mxu0 0
    %841 = vmatpush1.bf16.msra.mxu0 %v764
    %842 = vmatprep.subr.bf16.mxu0 0
    %843 = vmatpush1.bf16.msra.mxu0 %v765
    %844 = vmatprep.subr.bf16.mxu0 0
    %845 = vmatpush1.bf16.msra.mxu0 %v766
    %846 = vmatprep.subr.bf16.mxu0 0
    %847 = vmatpush1.bf16.msra.mxu0 %v767
    %848 = vmatprep.mubr.bf16.mxu0 %v550
    %849 = vmatmul.mubr.bf16.gmra.mrb[0].mxu0 %v549
    %v850 = vpop.f32.mrb[0].mxu0
    %v851 = vadd.f32 %v622, %v850
    %v852 = vpop.f32.mrb[0].mxu0
    %v853 = vpop.f32.mrb[0].mxu0
    %v854 = vpop.f32.mrb[0].mxu0
    %855 = vdwg.mxu0
    %856 = vmatprep.subr.bf16.mxu0 0
    %857 = vmatpush1.bf16.msra.mxu0 %v768
    %858 = vmatprep.subr.bf16.mxu0 0
    %859 = vmatpush1.bf16.msra.mxu0 %v769
    %860 = vmatprep.subr.bf16.mxu0 0
    %861 = vmatpush1.bf16.msra.mxu0 %v770
    %862 = vmatprep.subr.bf16.mxu0 0
    %863 = vmatpush1.bf16.msra.mxu0 %v771
    %864 = vmatprep.subr.bf16.mxu0 0
    %865 = vmatpush1.bf16.msra.mxu0 %v772
    %866 = vmatprep.subr.bf16.mxu0 0
    %867 = vmatpush1.bf16.msra.mxu0 %v773
    %868 = vmatprep.subr.bf16.mxu0 0
    %869 = vmatpush1.bf16.msra.mxu0 %v774
    %870 = vmatprep.subr.bf16.mxu0 0
    %871 = vmatpush1.bf16.msra.mxu0 %v775
    %872 = vmatprep.subr.bf16.mxu0 0
    %873 = vmatpush1.bf16.msra.mxu0 %v776
    %874 = vmatprep.subr.bf16.mxu0 0
    %875 = vmatpush1.bf16.msra.mxu0 %v777
    %876 = vmatprep.subr.bf16.mxu0 0
    %877 = vmatpush1.bf16.msra.mxu0 %v778
    %878 = vmatprep.subr.bf16.mxu0 0
    %879 = vmatpush1.bf16.msra.mxu0 %v779
    %880 = vmatprep.subr.bf16.mxu0 0
    %881 = vmatpush1.bf16.msra.mxu0 %v780
    %882 = vmatprep.subr.bf16.mxu0 0
    %883 = vmatpush1.bf16.msra.mxu0 %v781
    %884 = vmatprep.subr.bf16.mxu0 0
    %885 = vmatpush1.bf16.msra.mxu0 %v782
    %886 = vmatprep.subr.bf16.mxu0 0
    %887 = vmatpush1.bf16.msra.mxu0 %v783
    %888 = vmatprep.mubr.bf16.mxu0 %v552
    %889 = vmatmul.mubr.bf16.gmra.mrb[0].mxu0 %v551
    %v890 = vpop.f32.mrb[0].mxu0
    %v891 = vadd.f32 %v851, %v890
    %v892 = vpop.f32.mrb[0].mxu0
    %v893 = vpop.f32.mrb[0].mxu0
    %v894 = vpop.f32.mrb[0].mxu0
    %895 = vdwg.mxu0
    %v896 = vlaneseq
    %v897 = vand.u32 %v896, 127
    %v898 = vadd.s32 %v897, 1
    %v899 = vand.u32 %v897, 1
    %v900 = vmul.u32 %v899, 2
    %v901 = vsub.s32 %v898, %v900
    %902 = vrot.lane.b32.xlu0 %v897, 1
    %v903 = vpop.permute.xlu0 %902
    %904 = vrot.lane.b32.xlu0 %v891, 1
    %v905 = vpop.permute.xlu0 %904
    %906 = vrot.lane.b32.xlu0 %v891, 127
    %v907 = vpop.permute.xlu0 %906
    %vm908 = vcmp.eq.s32.totalorder %v903, %v901
    %v909 = vsel %vm908, %v905, %v907
    %v910 = vmax.f32 %v891, %v909
    %v911 = vadd.s32 %v897, 2
    %v912 = vand.u32 %v897, 2
    %v913 = vmul.u32 %v912, 2
    %v914 = vsub.s32 %v911, %v913
    %915 = vrot.lane.b32.xlu0 %v897, 2
    %v916 = vpop.permute.xlu0 %915
    %917 = vrot.lane.b32.xlu0 %v910, 2
    %v918 = vpop.permute.xlu0 %917
    %919 = vrot.lane.b32.xlu0 %v910, 126
    %v920 = vpop.permute.xlu0 %919
    %vm921 = vcmp.eq.s32.totalorder %v916, %v914
    %v922 = vsel %vm921, %v918, %v920
    %v923 = vmax.f32 %v910, %v922
    %v924 = vadd.s32 %v897, 4
    %v925 = vand.u32 %v897, 4
    %v926 = vmul.u32 %v925, 2
    %v927 = vsub.s32 %v924, %v926
    %928 = vrot.lane.b32.xlu0 %v897, 4
    %v929 = vpop.permute.xlu0 %928
    %930 = vrot.lane.b32.xlu0 %v923, 4
    %v931 = vpop.permute.xlu0 %930
    %932 = vrot.lane.b32.xlu0 %v923, 124
    %v933 = vpop.permute.xlu0 %932
    %vm934 = vcmp.eq.s32.totalorder %v929, %v927
    %v935 = vsel %vm934, %v931, %v933
    %v936 = vmax.f32 %v923, %v935
    %v937 = vadd.s32 %v897, 8
    %v938 = vand.u32 %v897, 8
    %v939 = vmul.u32 %v938, 2
    %v940 = vsub.s32 %v937, %v939
    %941 = vrot.lane.b32.xlu0 %v897, 8
    %v942 = vpop.permute.xlu0 %941
    %943 = vrot.lane.b32.xlu0 %v936, 8
    %v944 = vpop.permute.xlu0 %943
    %945 = vrot.lane.b32.xlu0 %v936, 120
    %v946 = vpop.permute.xlu0 %945
    %vm947 = vcmp.eq.s32.totalorder %v942, %v940
    %v948 = vsel %vm947, %v944, %v946
    %v949 = vmax.f32 %v936, %v948
    %v950 = vsub.f32 %v891, %v949
    %v951 = vmul.f32 %v950, 1.442695
    %v952 = vpow.pop %v951
    %953 = vrot.lane.b32.xlu0 %v952, 1
    %v954 = vpop.permute.xlu0 %953
    %955 = vrot.lane.b32.xlu0 %v952, 127
    %v956 = vpop.permute.xlu0 %955
    %v957 = vsel %vm908, %v954, %v956
    %v958 = vadd.f32 %v952, %v957
    %959 = vrot.lane.b32.xlu0 %v958, 2
    %v960 = vpop.permute.xlu0 %959
    %961 = vrot.lane.b32.xlu0 %v958, 126
    %v962 = vpop.permute.xlu0 %961
    %v963 = vsel %vm921, %v960, %v962
    %v964 = vadd.f32 %v958, %v963
    %965 = vrot.lane.b32.xlu0 %v964, 4
    %v966 = vpop.permute.xlu0 %965
    %967 = vrot.lane.b32.xlu0 %v964, 124
    %v968 = vpop.permute.xlu0 %967
    %v969 = vsel %vm934, %v966, %v968
    %v970 = vadd.f32 %v964, %v969
    %971 = vrot.lane.b32.xlu0 %v970, 8
    %v972 = vpop.permute.xlu0 %971
    %973 = vrot.lane.b32.xlu0 %v970, 120
    %v974 = vpop.permute.xlu0 %973
    %v975 = vsel %vm947, %v972, %v974
    %v976 = vadd.f32 %v970, %v975
    %v977 = vrcp.pop %v976
    %v978 = vmul.f32 %v976, %v977
    %v979 = vsub.f32 2.0, %v978
    %v980 = vmul.f32 %v977, %v979
    %v981 = vmul.f32 %v952, %v980
    %982 = vst [vmem:[%s5] sm:$0xff] %v981
    // Predicated region
    $region30: #{graph_decoder_apply.1} parent=1 // pred_check
      _
    $region31: #{graph_decoder_apply.1} parent=1 // pred_check_branch
      %984 = sbr.rel (0) target = $region33
    $region32: #{graph_decoder_apply.1} parent=1 // pred_region
      _
    $region33: #{graph_decoder_apply.1} parent=1 // pred_fallthru
      _
    // Predicated region
    $region34: #{graph_decoder_apply.1} parent=1 // pred_check
      _
    $region35: #{graph_decoder_apply.1} parent=1 // pred_check_branch
      %986 = sbr.rel (0) target = $region37
    $region36: #{graph_decoder_apply.1} parent=1 // pred_region
      _
    $region37: #{graph_decoder_apply.1} parent=1 // pred_fallthru
      _
    %987 = vsyncpa [#allocation3], 1
    %988 = vsyncpa [#allocation5], 1

</llo_original>
